<compile_context>
chip_gen: v5e
topology: v5e:2x2
jax: 0.10.0
libtpu: 0.0.40
codegen_flags: <defaults>
</compile_context>

<pallas_src>
import math

import jax
import jax.numpy as jnp
from jax import lax
from jax.experimental import pallas as pl
from jax.experimental.pallas import tpu as pltpu


def _round_up(a, b):
    return (a + b - 1) // b * b


def _xlogx(p):
    return 0.0 if p <= 0.0 else p * math.log(p)


def _make_kernel(size, padding_idx, smoothing, tv, write_td):
    confidence = 1.0 - smoothing
    smooth_val = smoothing / (size - 2)
    # Constant "entropy" part of the per-row KL: sum_c td_c * log(td_c)
    # (one 'confidence' entry + (V-2) 'smooth' entries for a valid row).
    h_const = _xlogx(confidence) + (size - 2) * _xlogx(smooth_val)
    ragged_v = (size % tv) != 0  # last vocab tile has out-of-bounds columns

    def kernel(x_ref, tgt_ref, *out_refs):
        if write_td:
            td_ref, row_loss_ref = out_refs
        else:
            (row_loss_ref,) = out_refs

        j = pl.program_id(1)                         # vocab-tile index
        x = x_ref[...].astype(jnp.float32)           # (TN, TV)
        tgt = tgt_ref[...]                           # (TN, 1) int32
        _, tv_ = x.shape
        base_col = j * tv_

        # (1, TV) lane iota compared against tile-shifted scalars — no full
        # (TN, TV) iota materialization, no full-tile integer add.
        lane = lax.broadcasted_iota(jnp.int32, (1, tv_), 1)
        is_tgt = lane == (tgt - base_col)            # (TN, TV) broadcast cmp
        row_valid = tgt != padding_idx               # (TN, 1)

        col_kill = lane == (padding_idx - base_col)  # (1, TV)
        if ragged_v:
            col_kill = jnp.logical_or(col_kill, lane >= (size - base_col))
        zero_mask = jnp.logical_or(col_kill, jnp.logical_not(row_valid))

        base = jnp.where(is_tgt, jnp.float32(confidence), jnp.float32(smooth_val))
        td = jnp.where(zero_mask, jnp.float32(0.0), base)
        if write_td:
            td_ref[...] = td.astype(td_ref.dtype)

        # KL partial for this tile: -sum(td * x). td is already 0 for invalid
        # rows / padding column, so no extra row mask is needed. For ragged
        # vocab tiles, select through zero_mask so undefined OOB x (possibly
        # NaN/Inf) can never poison the row sum.
        if ragged_v:
            prod = jnp.where(zero_mask, jnp.float32(0.0), base * x)
        else:
            prod = td * x
        partial = -jnp.sum(prod, axis=-1, keepdims=True)   # (TN, 1)

        # Per-row loss block is resident across the vocab-tile axis:
        # init with the constant entropy term on the first tile, accumulate.
        @pl.when(j == 0)
        def _():
            row_loss_ref[...] = jnp.where(row_valid, jnp.float32(h_const),
                                          jnp.float32(0.0))

        row_loss_ref[...] += partial

    return kernel


def label_smoothing_forward(x, target, *, size, padding_idx, smoothing,
                            block_n=256, block_v=4096, return_true_dist=True):
    """Matches LabelSmoothing.forward.

    Returns (loss_scalar, true_dist) if return_true_dist else loss_scalar.
    """
    n, v = x.shape
    assert v == size
    assert size > 2, "label smoothing requires size > 2"

    itemsize = jnp.dtype(x.dtype).itemsize
    sub = {1: 32, 2: 16, 4: 8}.get(itemsize, 8)   # dtype-native sublane multiple

    # ---- tile sizes (no wrapper-side padding: ragged edge tiles are masked
    # in-kernel, so x / true_dist are never copied outside the kernel) ----
    tn = _round_up(max(sub, min(block_n, n)), sub)
    # Keep the "parallel" row-tile axis populated so both v7x TensorCores work.
    while tn > sub and pl.cdiv(n, tn) < 4:
        tn = max(sub, (tn // 2) // sub * sub)
    if v <= max(block_v, 128):
        tv = v                                     # single full-dim vocab tile
    else:
        tv = _round_up(block_v, 128)

    # ---- VMEM budget: double-buffered x (+ true_dist) tiles must sit well
    # under the per-core capacity (v7x: 64 MiB; v5e/v6e: 128 MiB) ----
    try:
        cap = int(getattr(pltpu.get_tpu_info(), "vmem_capacity_bytes", 0)) or (64 << 20)
    except Exception:
        cap = 64 << 20

    def _buf_bytes(tn_, tv_):
        per_tile = tn_ * tv_ * itemsize            # x tile
        if return_true_dist:
            per_tile += tn_ * tv_ * itemsize       # true_dist tile (x.dtype)
        return 2 * per_tile                        # double-buffered

    budget = int(0.55 * cap)
    while _buf_bytes(tn, tv) > budget and tv > 128:
        tv = max(128, _round_up(tv // 2, 128))
    while _buf_bytes(tn, tv) > budget and tn > sub:
        tn = max(sub, (tn // 2) // sub * sub)
    vmem_bytes = int(min(int(0.75 * cap),
                         max(32 << 20, _buf_bytes(tn, tv) + (8 << 20))))

    grid = (pl.cdiv(n, tn), pl.cdiv(v, tv))
    tgt2d = target.astype(jnp.int32).reshape(n, 1)

    kernel = _make_kernel(size, padding_idx, smoothing, tv, return_true_dist)

    in_specs = [
        pl.BlockSpec((tn, tv), lambda i, j: (i, j)),   # x
        pl.BlockSpec((tn, 1), lambda i, j: (i, 0)),    # target
    ]
    row_loss_spec = pl.BlockSpec((tn, 1), lambda i, j: (i, 0))
    if return_true_dist:
        out_shape = (jax.ShapeDtypeStruct((n, v), x.dtype),
                     jax.ShapeDtypeStruct((n, 1), jnp.float32))
        out_specs = (pl.BlockSpec((tn, tv), lambda i, j: (i, j)), row_loss_spec)
    else:
        out_shape = jax.ShapeDtypeStruct((n, 1), jnp.float32)
        out_specs = row_loss_spec

    bytes_accessed = n * v * itemsize + n * 8
    if return_true_dist:
        bytes_accessed += n * v * itemsize

    result = pl.pallas_call(
        kernel,
        out_shape=out_shape,
        grid=grid,
        in_specs=in_specs,
        out_specs=out_specs,
        compiler_params=pltpu.CompilerParams(
            dimension_semantics=("parallel", "arbitrary"),
            vmem_limit_bytes=vmem_bytes,
        ),
        cost_estimate=pl.CostEstimate(flops=2 * n * v, transcendentals=0,
                                      bytes_accessed=bytes_accessed),
    )(x, tgt2d)

    if return_true_dist:
        true_dist, row_loss = result
        return jnp.sum(row_loss), true_dist
    return jnp.sum(result)


def _reference(x, target, size, padding_idx, smoothing):
    confidence = 1.0 - smoothing
    smooth_val = smoothing / (size - 2)
    n, v = x.shape
    col = jnp.arange(v)[None, :]
    tgt = target[:, None]
    td = jnp.where(col == tgt, confidence, smooth_val)
    td = jnp.where(col == padding_idx, 0.0, td)
    td = jnp.where(tgt == padding_idx, 0.0, td)
    safe_td = jnp.where(td > 0, td, 1.0)
    elem = jnp.where(td > 0, td * (jnp.log(safe_td) - x), 0.0)
    return jnp.sum(elem), td


if __name__ == "__main__":
    # Small shapes chosen to exercise the full grid + ragged-tile paths:
    #   N=13 rows (row tile 8 -> ragged last row block) and V=200
    #   (vocab tile 128 -> ragged last vocab block) -> grid (2, 2).
    SIZE = 200
    PADDING_IDX = 0
    SMOOTHING = 0.1
    N = 13

    key = jax.random.PRNGKey(0)
    k1, k2 = jax.random.split(key)

    # x must be log-probabilities (as fed to KLDivLoss in the transformer).
    logits = jax.random.normal(k1, (N, SIZE), dtype=jnp.float32)
    x = jax.nn.log_softmax(logits, axis=-1)
    target = jax.random.randint(k2, (N,), 0, SIZE, dtype=jnp.int32)
    # Ensure at least one padding target to exercise the row-mask path.
    target = target.at[1].set(PADDING_IDX)

    ref_loss, ref_td = _reference(x, target, SIZE, PADDING_IDX, SMOOTHING)

    # (a) small explicit tiles: ragged row + ragged vocab tiles, 2x2 grid.
    loss_a, td_a = label_smoothing_forward(
        x, target, size=SIZE, padding_idx=PADDING_IDX, smoothing=SMOOTHING,
        block_n=8, block_v=128)

    # (b) default tiles: single full-dim vocab tile.
    loss_b, td_b = label_smoothing_forward(
        x, target, size=SIZE, padding_idx=PADDING_IDX, smoothing=SMOOTHING)

    # (c) loss-only fast path (no true_dist writeback).
    loss_c = label_smoothing_forward(
        x, target, size=SIZE, padding_idx=PADDING_IDX, smoothing=SMOOTHING,
        block_n=8, block_v=128, return_true_dist=False)

    jax.block_until_ready((loss_a, td_a, loss_b, td_b, loss_c))

    for loss, td in ((loss_a, td_a), (loss_b, td_b)):
        assert jnp.allclose(loss, ref_loss, rtol=1e-4, atol=1e-4), (loss, ref_loss)
        assert jnp.allclose(td.astype(jnp.float32), ref_td, rtol=1e-6, atol=1e-6)
    assert jnp.allclose(loss_c, ref_loss, rtol=1e-4, atol=1e-4), (loss_c, ref_loss)

    print("KERNEL_OK")
</pallas_src>

<mosaic_0001>
module attributes {stable_mosaic.version = 11 : i64} {
  func.func @kernel(%arg0: i32, %arg1: i32, %arg2: memref<8x128xf32, #tpu.memory_space<vmem>>, %arg3: memref<8x1xi32, #tpu.memory_space<vmem>>, %arg4: memref<8x128xf32, #tpu.memory_space<vmem>>, %arg5: memref<8x1xf32, #tpu.memory_space<vmem>>) attributes {dimension_semantics = [#tpu.dimension_semantics<parallel>, #tpu.dimension_semantics<arbitrary>], iteration_bounds = array<i64: 2, 2>, scalar_prefetch = 0 : i64, scratch_operands = 0 : i64, tpu.core_type = #tpu.core_type<tc>, window_params = [{transform_indices = @transform_0, window_bounds = array<i64: 8, 128>}, {transform_indices = @transform_1, window_bounds = array<i64: 8, 1>}, {transform_indices = @transform_2, window_bounds = array<i64: 8, 128>}, {transform_indices = @transform_3, window_bounds = array<i64: 8, 1>}]} {
    %c0 = arith.constant 0 : index
    %c0_0 = arith.constant 0 : index
    %0 = vector.load %arg2[%c0, %c0_0] : memref<8x128xf32, #tpu.memory_space<vmem>>, vector<8x128xf32>
    %c0_1 = arith.constant 0 : index
    %c0_2 = arith.constant 0 : index
    %1 = vector.load %arg3[%c0_1, %c0_2] : memref<8x1xi32, #tpu.memory_space<vmem>>, vector<8x1xi32>
    %c128_i32 = arith.constant 128 : i32
    %2 = arith.muli %arg1, %c128_i32 : i32
    %3 = tpu.iota {dimensions = array<i32: 1>} : vector<1x128xi32>
    %4 = vector.broadcast %2 : i32 to vector<8x1xi32>
    %5 = arith.subi %1, %4 : vector<8x1xi32>
    %6 = vector.broadcast %3 : vector<1x128xi32> to vector<8x128xi32>
    %7 = vector.broadcast %5 : vector<8x1xi32> to vector<8x128xi32>
    %8 = arith.cmpi eq, %6, %7 : vector<8x128xi32>
    %c0_i32 = arith.constant 0 : i32
    %9 = vector.broadcast %c0_i32 : i32 to vector<8x1xi32>
    %10 = arith.cmpi ne, %1, %9 : vector<8x1xi32>
    %c0_i32_3 = arith.constant 0 : i32
    %11 = arith.subi %c0_i32_3, %2 : i32
    %12 = vector.broadcast %11 : i32 to vector<1x128xi32>
    %13 = arith.cmpi eq, %3, %12 : vector<1x128xi32>
    %c200_i32 = arith.constant 200 : i32
    %14 = arith.subi %c200_i32, %2 : i32
    %15 = vector.broadcast %14 : i32 to vector<1x128xi32>
    %16 = arith.cmpi sge, %3, %15 : vector<1x128xi32>
    %17 = arith.ori %13, %16 : vector<1x128xi1>
    %cst = arith.constant dense<true> : vector<8x1xi1>
    %18 = arith.xori %10, %cst : vector<8x1xi1>
    %19 = vector.broadcast %17 : vector<1x128xi1> to vector<8x128xi1>
    %20 = vector.broadcast %18 : vector<8x1xi1> to vector<8x128xi1>
    %21 = arith.ori %19, %20 : vector<8x128xi1>
    %cst_4 = arith.constant 0.899999976 : f32
    %cst_5 = arith.constant 5.05050528E-4 : f32
    %22 = vector.broadcast %cst_4 : f32 to vector<8x128xf32>
    %23 = vector.broadcast %cst_5 : f32 to vector<8x128xf32>
    %24 = arith.select %8, %22, %23 : vector<8x128xi1>, vector<8x128xf32>
    %cst_6 = arith.constant 0.000000e+00 : f32
    %25 = vector.broadcast %cst_6 : f32 to vector<8x128xf32>
    %26 = arith.select %21, %25, %24 : vector<8x128xi1>, vector<8x128xf32>
    %c0_7 = arith.constant 0 : index
    %c0_8 = arith.constant 0 : index
    %27 = vector.load %arg4[%c0_7, %c0_8] : memref<8x128xf32, #tpu.memory_space<vmem>>, vector<8x128xf32>
    tpu.vector_store %arg4[%c0_7, %c0_8], %26 {strides = array<i32>} : memref<8x128xf32, #tpu.memory_space<vmem>>, vector<8x128xf32>,
    %28 = arith.mulf %24, %0 : vector<8x128xf32>
    %cst_9 = arith.constant 0.000000e+00 : f32
    %29 = vector.broadcast %cst_9 : f32 to vector<8x128xf32>
    %30 = arith.select %21, %29, %28 : vector<8x128xi1>, vector<8x128xf32>
    %cst_10 = arith.constant dense<0.000000e+00> : vector<8xf32>
    %31 = vector.multi_reduction <add>, %30, %cst_10 [1] : vector<8x128xf32> to vector<8xf32>
    %32 = vector.shape_cast %31 : vector<8xf32> to vector<8x1xf32>
    %cst_11 = arith.constant 0.000000e+00 : f32
    %33 = vector.broadcast %cst_11 : f32 to vector<8x1xf32>
    %34 = arith.subf %33, %32 : vector<8x1xf32>
    %c0_i32_12 = arith.constant 0 : i32
    %35 = arith.cmpi eq, %arg1, %c0_i32_12 : i32
    %36 = arith.extui %35 : i1 to i32
    %c0_i32_13 = arith.constant 0 : i32
    %37 = arith.cmpi ne, %36, %c0_i32_13 : i32
    scf.if %37 {
      %cst_18 = arith.constant -0.853909671 : f32
      %cst_19 = arith.constant 0.000000e+00 : f32
      %41 = vector.broadcast %cst_18 : f32 to vector<8x1xf32>
      %42 = vector.broadcast %cst_19 : f32 to vector<8x1xf32>
      %43 = arith.select %10, %41, %42 : vector<8x1xi1>, vector<8x1xf32>
      %c0_20 = arith.constant 0 : index
      %c0_21 = arith.constant 0 : index
      %44 = vector.load %arg5[%c0_20, %c0_21] : memref<8x1xf32, #tpu.memory_space<vmem>>, vector<8x1xf32>
      tpu.vector_store %arg5[%c0_20, %c0_21], %43 {strides = array<i32>} : memref<8x1xf32, #tpu.memory_space<vmem>>, vector<8x1xf32>,
    } else {
    }
    %c0_14 = arith.constant 0 : index
    %c0_15 = arith.constant 0 : index
    %38 = vector.load %arg5[%c0_14, %c0_15] : memref<8x1xf32, #tpu.memory_space<vmem>>, vector<8x1xf32>
    %39 = arith.addf %38, %34 : vector<8x1xf32>
    %c0_16 = arith.constant 0 : index
    %c0_17 = arith.constant 0 : index
    %40 = vector.load %arg5[%c0_16, %c0_17] : memref<8x1xf32, #tpu.memory_space<vmem>>, vector<8x1xf32>
    tpu.vector_store %arg5[%c0_16, %c0_17], %39 {strides = array<i32>} : memref<8x1xf32, #tpu.memory_space<vmem>>, vector<8x1xf32>,
    return
  }
  func.func @transform_0(%arg0: i32, %arg1: i32) -> (i32, i32) {
    %c0_i32 = arith.constant 0 : i32
    return %arg0, %arg1 : i32, i32
  }
  func.func @transform_1(%arg0: i32, %arg1: i32) -> (i32, i32) {
    %c0_i32 = arith.constant 0 : i32
    %c0_i32_0 = arith.constant 0 : i32
    return %arg0, %c0_i32 : i32, i32
  }
  func.func @transform_2(%arg0: i32, %arg1: i32) -> (i32, i32) {
    %c0_i32 = arith.constant 0 : i32
    return %arg0, %arg1 : i32, i32
  }
  func.func @transform_3(%arg0: i32, %arg1: i32) -> (i32, i32) {
    %c0_i32 = arith.constant 0 : i32
    %c0_i32_0 = arith.constant 0 : i32
    return %arg0, %c0_i32 : i32, i32
  }
}

</mosaic_0001>

<llo_original>
// kernel: tpu_custom_call.1
$region0: #{tpu_custom_call.1}
  #allocation0 [shape = 'u32[]', space=smem, size = 0x4, offset = 0x4, fixed_abs, tag = 'smem constant byte address 0x4 - core index']
  #allocation1 [shape = 'u32[72,128]{1,0:T(1,128)}', space=vmem, size = 0x9000, scoped, tag = 'internal scratch']
  %s0 = inlined_call_operand.hbm [shape: f32[13,200], index: 0, kind: input, shape index: {}]
  %s1 = inlined_call_operand.vmem [shape: s32[13,1], index: 1, kind: input, shape index: {}]
  %s2 = inlined_call_operand.hbm [shape: f32[13,200], index: 2, kind: output, shape index: {0}]
  %s3 = inlined_call_operand.vmem [shape: f32[13,1], index: 3, kind: output, shape index: {1}]
  %4 = xla_tuple %s2, %s3
  %s5 = sld [smem:[#allocation0]]
  $region57: #{tpu_custom_call.1} parent=0
    _
  %s7 = ssub.s32 1, %s5
  %s8 = scalar_select 0, %s7, %s5
  $region1: #{tpu_custom_call.1} parent=0
    #allocation2 [shape = 'u8[8192]{0}', space=vmem, size = 0x2000, scoped, tag = 'input window, operand 0']
    #allocation3 [shape = 's32[2]{0}', space=sflag, size = 0x8, scoped, tag = 'scoped memory for tpu_custom_call.1']
    #allocation4 [shape = 's32[2]{0}', space=sflag, size = 0x8, scoped, tag = 'scoped memory for tpu_custom_call.1']
    #allocation5 [shape = 'u8[8192]{0}', space=vmem, size = 0x2000, scoped, tag = 'output window, operand 0']
    %9 = vsyncpa [#allocation3], 0
    %s10 = scalar_lea.sflag [#allocation3], 1
    %11 = vsyncpa %s10, 0
    %12 = vsyncpa [#allocation4], 0
    %s13 = scalar_lea.sflag [#allocation4], 1
    %14 = vsyncpa %s13, 0
    loop: start=0, step=1, limit=6
    $region2: #{tpu_custom_call.1} parent=1 // loop_pre_header
      _
    $region3: #{tpu_custom_call.1} parent=1 // loop_header
      %s16 = sphi 0, %s20
      %p17 = scmp.ge.s32.totalorder %s16, 6
      %s23 = sphi 0, %s35
      %s24 = sphi 0, %s31
      %s25 = sphi 0, %s23
      %s26 = sphi 0, %s24
      %s27 = sphi 0, %s25
      %s28 = sphi 0, %s26
      %s40 = sphi 0, %s42
      %s43 = sphi 0, %s40
      %s44 = sphi 0, %s43
      %s60 = sphi 0, %s44
      %s66 = sphi 0, %s68
      %s69 = sphi 0, %s66
      %s70 = sphi 0, %s69
      %s86 = sphi 0, %s70
      %s94 = sphi 0, %s96
      %s97 = sphi 0, %s94
      %s98 = sphi 0, %s97
      %s114 = sphi 0, %s98
      %s120 = sphi 0, %s122
      %s123 = sphi 0, %s120
      %s124 = sphi 0, %s123
      %s140 = sphi 0, %s124
    $region4: #{tpu_custom_call.1} parent=1 // loop_header_branch
      %19 = sbr.rel (%p17) target = $region8
    $region5: #{tpu_custom_call.1} parent=1 // loop_body
      %s21 = ssub.s32 %s16, 1
      %s22 = ssub.s32 %s16, 2
      %s29 = sadd.s32 1, %s24
      %p30 = scmp.ge.s32.totalorder %s29, 2
      %s31 = scalar_select %p30, 0, %s29
      %s32 = sadd.s32 1, %s23
      %s33 = scalar_select %p30, %s32, %s23
      %p34 = scmp.ge.s32.totalorder %s33, 2
      %s35 = scalar_select %p34, 0, %s33
      %s36 = ssub.s32 %s23, %s35
      %s37 = ssub.s32 %s24, %s31
      %s38 = sor.u32 %s36, %s37
      %p39 = scmp.eq.s32.totalorder %s38, 0
      %s41 = sadd.s32 %s40, 1
      %s42 = scalar_select %p39, %s40, %s41
      %p45 = pneg %p39
      %p46 = scmp.eq.s32.totalorder %s16, 3
      %p47 = por %p45, %p46
      %p48 = scmp.ne.s32.totalorder %s40, %s43
      %p49 = scmp.eq.s32.totalorder %s16, 0
      %p50 = por %p48, %p49
      %p51 = scmp.ne.s32.totalorder %s40, %s43
      %p52 = scmp.eq.s32.totalorder %s21, 3
      %p53 = por %p51, %p52
      %p54 = scmp.ne.s32.totalorder %s43, %s44
      %p55 = scmp.eq.s32.totalorder %s21, 0
      %p56 = por %p54, %p55
      %p57 = scmp.ne.s32.totalorder %s43, %s44
      %p58 = scmp.eq.s32.totalorder %s22, 3
      %p59 = por %p57, %p58
      %p61 = scmp.ne.s32.totalorder %s44, %s60
      %p62 = scmp.eq.s32.totalorder %s22, 0
      %p63 = por %p61, %p62
      %s64 = ssub.s32 %s23, %s35
      %p65 = scmp.eq.s32.totalorder %s64, 0
      %s67 = sadd.s32 %s66, 1
      %s68 = scalar_select %p65, %s66, %s67
      %p71 = pneg %p65
      %p72 = scmp.eq.s32.totalorder %s16, 3
      %p73 = por %p71, %p72
      %p74 = scmp.ne.s32.totalorder %s66, %s69
      %p75 = scmp.eq.s32.totalorder %s16, 0
      %p76 = por %p74, %p75
      %p77 = scmp.ne.s32.totalorder %s66, %s69
      %p78 = scmp.eq.s32.totalorder %s21, 3
      %p79 = por %p77, %p78
      %p80 = scmp.ne.s32.totalorder %s69, %s70
      %p81 = scmp.eq.s32.totalorder %s21, 0
      %p82 = por %p80, %p81
      %p83 = scmp.ne.s32.totalorder %s69, %s70
      %p84 = scmp.eq.s32.totalorder %s22, 3
      %p85 = por %p83, %p84
      %p87 = scmp.ne.s32.totalorder %s70, %s86
      %p88 = scmp.eq.s32.totalorder %s22, 0
      %p89 = por %p87, %p88
      %s90 = ssub.s32 %s23, %s35
      %s91 = ssub.s32 %s24, %s31
      %s92 = sor.u32 %s90, %s91
      %p93 = scmp.eq.s32.totalorder %s92, 0
      %s95 = sadd.s32 %s94, 1
      %s96 = scalar_select %p93, %s94, %s95
      %p99 = pneg %p93
      %p100 = scmp.eq.s32.totalorder %s16, 3
      %p101 = por %p99, %p100
      %p102 = scmp.ne.s32.totalorder %s94, %s97
      %p103 = scmp.eq.s32.totalorder %s16, 0
      %p104 = por %p102, %p103
      %p105 = scmp.ne.s32.totalorder %s94, %s97
      %p106 = scmp.eq.s32.totalorder %s21, 3
      %p107 = por %p105, %p106
      %p108 = scmp.ne.s32.totalorder %s97, %s98
      %p109 = scmp.eq.s32.totalorder %s21, 0
      %p110 = por %p108, %p109
      %p111 = scmp.ne.s32.totalorder %s97, %s98
      %p112 = scmp.eq.s32.totalorder %s22, 3
      %p113 = por %p111, %p112
      %p115 = scmp.ne.s32.totalorder %s98, %s114
      %p116 = scmp.eq.s32.totalorder %s22, 0
      %p117 = por %p115, %p116
      %s118 = ssub.s32 %s23, %s35
      %p119 = scmp.eq.s32.totalorder %s118, 0
      %s121 = sadd.s32 %s120, 1
      %s122 = scalar_select %p119, %s120, %s121
      %p125 = pneg %p119
      %p126 = scmp.eq.s32.totalorder %s16, 3
      %p127 = por %p125, %p126
      %p128 = scmp.ne.s32.totalorder %s120, %s123
      %p129 = scmp.eq.s32.totalorder %s16, 0
      %p130 = por %p128, %p129
      %p131 = scmp.ne.s32.totalorder %s120, %s123
      %p132 = scmp.eq.s32.totalorder %s21, 3
      %p133 = por %p131, %p132
      %p134 = scmp.ne.s32.totalorder %s123, %s124
      %p135 = scmp.eq.s32.totalorder %s21, 0
      %p136 = por %p134, %p135
      %p137 = scmp.ne.s32.totalorder %s123, %s124
      %p138 = scmp.eq.s32.totalorder %s22, 3
      %p139 = por %p137, %p138
      %p141 = scmp.ne.s32.totalorder %s124, %s140
      %p142 = scmp.eq.s32.totalorder %s22, 0
      %p143 = por %p141, %p142
      %p144 = scmp.le.s32.totalorder 1, %s16
      %p145 = scmp.lt.s32.totalorder %s16, 5
      %p146 = pnand %p144, %p145
      %p147 = pneg %p146
      // Predicated region
      $region9: #{tpu_custom_call.1} parent=5 // pred_check
        _
      $region10: #{tpu_custom_call.1} parent=5 // pred_check_branch
        %149 = sbr.rel (%p146) target = $region12
      $region11: #{tpu_custom_call.1} parent=5 // pred_region
        %s150 = ssub.s32 %s16, 1
      $region12: #{tpu_custom_call.1} parent=5 // pred_fallthru
        _
      %p151 = scmp.lt.s32.totalorder %s16, 4
      // Predicated region
      $region13: #{tpu_custom_call.1} parent=5 // pred_check
        %p152 = pneg %p151
      $region14: #{tpu_custom_call.1} parent=5 // pred_check_branch
        %154 = sbr.rel (%p152) target = $region16
      $region15: #{tpu_custom_call.1} parent=5 // pred_region
        // Predicated region
        $region17: #{tpu_custom_call.1} parent=15 // pred_check
          %p155 = pneg %p50
        $region18: #{tpu_custom_call.1} parent=15 // pred_check_branch
          %157 = sbr.rel (%p155) target = $region20
        $region19: #{tpu_custom_call.1} parent=15 // pred_region
          %s158 = sand.u32 %s40, 1
          %s159 = scalar_lea.sflag [#allocation3], %s158
          %s160 = sand.u32 %s40, 1
          %s161 = smul.addr %s160, 8
          %s162 = scalar_lea.vmem [#allocation2], %s161
          %164 = vsyncadd %s159, 0
          %s165 = smul.addr %s23, 2
          %s166 = sadd.s32 %s24, %s165
          %s167 = smul.addr %s166, 8
          %s168 = scalar_lea.hbm %s0, %s167
          %s170 = sshll.u32 %s168, 4
          %s171 = int_to_ptr.hbm [resolvable:$true] %s170
          %s172 = sshll.u32 %s162, 4
          %s173 = int_to_ptr.vmem [resolvable:$true] %s172
          %175 = dma.hbm_to_vmem [thread:$0]  %s171, 128, %s173, %s159
        $region20: #{tpu_custom_call.1} parent=15 // pred_fallthru
          _
        // Predicated region
        $region21: #{tpu_custom_call.1} parent=15 // pred_check
          %p176 = pneg %p76
        $region22: #{tpu_custom_call.1} parent=15 // pred_check_branch
          %178 = sbr.rel (%p176) target = $region24
        $region23: #{tpu_custom_call.1} parent=15 // pred_region
          %p179 = scmp.lt.s32.totalorder %s23, 1
          %s180 = scalar_select %p179, %s23, 1
          %s181 = smul.addr %s180, 8
          %s182 = scalar_lea.vmem %s1, %s181
        $region24: #{tpu_custom_call.1} parent=15 // pred_fallthru
          _
      $region16: #{tpu_custom_call.1} parent=5 // pred_fallthru
        _
      %p183 = scmp.le.s32.totalorder 1, %s16
      %p184 = scmp.lt.s32.totalorder %s16, 5
      %p185 = pnand %p183, %p184
      %p186 = pneg %p185
      // Predicated region
      $region25: #{tpu_custom_call.1} parent=5 // pred_check
        _
      $region26: #{tpu_custom_call.1} parent=5 // pred_check_branch
        %188 = sbr.rel (%p185) target = $region28
      $region27: #{tpu_custom_call.1} parent=5 // pred_region
        %s189 = ssub.s32 %s16, 1
        %s190 = sand.u32 %s43, 1
        %s191 = scalar_lea.sflag [#allocation3], %s190
        %s192 = sand.u32 %s43, 1
        %s193 = smul.addr %s192, 8
        %s194 = scalar_lea.vmem [#allocation2], %s193
        // Predicated region
        $region29: #{tpu_custom_call.1} parent=27 // pred_check
          %p195 = pneg %p56
        $region30: #{tpu_custom_call.1} parent=27 // pred_check_branch
          %197 = sbr.rel (%p195) target = $region32
        $region31: #{tpu_custom_call.1} parent=27 // pred_region
          %199 = dma.done %s191, 128
        $region32: #{tpu_custom_call.1} parent=27 // pred_fallthru
          _
        %s200 = sand.u32 %s43, 1
        %s201 = scalar_lea.sflag [#allocation3], %s200
        %s202 = sand.u32 %s43, 1
        %s203 = smul.addr %s202, 8
        %s204 = scalar_lea.vmem [#allocation2], %s203
        %p205 = pneg %p56
        %p206 = pneg %p53
        %p207 = scmp.lt.s32.totalorder %s25, 1
        %s208 = scalar_select %p207, %s25, 1
        %s209 = smul.addr %s208, 8
        %s210 = scalar_lea.vmem %s1, %s209
        %p211 = pneg %p82
        %p212 = pneg %p79
        %p213 = pneg %p110
        %p214 = pneg %p107
        %s215 = sand.u32 %s97, 1
        %s216 = scalar_lea.sflag [#allocation4], %s215
        %s217 = sand.u32 %s97, 1
        %s218 = smul.addr %s217, 8
        %s219 = scalar_lea.vmem [#allocation5], %s218
        %p220 = pneg %p136
        %p221 = pneg %p133
        %p222 = scmp.lt.s32.totalorder %s25, 1
        %s223 = scalar_select %p222, %s25, 1
        %s224 = smul.addr %s223, 8
        %s225 = scalar_lea.vmem %s3, %s224
        %p226 = scmp.lt.s32.totalorder %s25, 1
        %s227 = scalar_select %p226, %s25, 1
        %s228 = smul.addr %s227, 8
        %s229 = scalar_lea.vmem %s1, %s228
        %p230 = scmp.lt.s32.totalorder %s25, 1
        %s231 = scalar_select %p230, %s25, 1
        %s232 = smul.addr %s231, 8
        %s233 = scalar_lea.vmem %s3, %s232
        %v234 = vld [vmem:[%s194] sm:$0xff]
        %v235 = vld [vmem:[%s229] sm:$0xff]
        %s236 = smul.u32 %s26, 128
        %v237 = vlaneseq
        %v238 = vand.u32 %v237, 127
        %v239 = vstv %s236
        %v240 = vsub.s32 %v235, %v239
        %241 = vset.pattern.permute.xlu0 0
        %242 = vperm.xlu0 %241, %v240
        %v243 = vpop.permute.xlu0 %242
        %vm244 = vcmp.eq.s32.totalorder %v238, %v243
        %vm245 = vcmp.ne.s32.totalorder %v235, 0
        %s246 = ssub.s32 0, %s236
        %v247 = vstv %s246
        %vm248 = vcmp.eq.s32.totalorder %v238, %v247
        %s249 = ssub.s32 200, %s236
        %v250 = vstv %s249
        %vm251 = vcmp.ge.s32.totalorder %v238, %v250
        %vm252 = vmor %vm248, %vm251
        %vm253 = vmxor %vm245, 1
        %v254 = vsel %vm252, 1, 0
        %vm255 = vcmp.eq.s32.totalorder %v254, 1
        %v256 = vsel %vm253, 1, 0
        %257 = vset.pattern.permute.xlu0 0
        %258 = vperm.xlu0 %257, %v256
        %v259 = vpop.permute.xlu0 %258
        %vm260 = vcmp.eq.s32.totalorder %v259, 1
        %vm261 = vmor %vm255, %vm260
        %v262 = vsel %vm244, 0.9, 0.0005050505
        %v263 = vsel %vm261, 0.0, %v262
        %264 = vst [vmem:[%s219] sm:$0xff] %v263
        %v265 = vmul.f32 %v262, %v234
        %v266 = vsel %vm261, 0.0, %v265
        %267 = vadd.xlane.f32.xlu0 %v266
        %v268 = vpop.xlane.xlu0 %267
        %v269 = vsub.f32 0.0, %v268
        %p270 = scmp.eq.s32.totalorder %s26, 0
        // Predicated region
        $region33: #{tpu_custom_call.1} parent=27 // pred_check
          %p271 = pneg %p270
        $region34: #{tpu_custom_call.1} parent=27 // pred_check_branch
          %273 = sbr.rel (%p271) target = $region36
        $region35: #{tpu_custom_call.1} parent=27 // pred_region
          %v274 = vsel %vm245, -0.8539097, 0.0
          %vm275 = vcmask 7168
          %276 = vst.msk [vmem:[%s233] sm:$0xff] %vm275, %v274
        $region36: #{tpu_custom_call.1} parent=27 // pred_fallthru
          _
        %v277 = vld [vmem:[%s233] sm:$0xff]
        %v278 = vadd.f32 %v277, %v269
        %vm279 = vcmask 7168
        %280 = vst.msk [vmem:[%s233] sm:$0xff] %vm279, %v278
        %s281 = sand.u32 %s97, 1
        %s282 = scalar_lea.sflag [#allocation4], %s281
        %s283 = sand.u32 %s97, 1
        %s284 = smul.addr %s283, 8
        %s285 = scalar_lea.vmem [#allocation5], %s284
        %p286 = scmp.lt.s32.totalorder %s25, 1
        %s287 = scalar_select %p286, %s25, 1
        %s288 = smul.addr %s287, 8
        %s289 = scalar_lea.vmem %s3, %s288
        // Predicated region
        $region37: #{tpu_custom_call.1} parent=27 // pred_check
          %p290 = pneg %p107
        $region38: #{tpu_custom_call.1} parent=27 // pred_check_branch
          %292 = sbr.rel (%p290) target = $region40
        $region39: #{tpu_custom_call.1} parent=27 // pred_region
          %294 = vsyncadd %s282, 0
          %s295 = smul.addr %s25, 2
          %s296 = sadd.s32 %s26, %s295
          %s297 = smul.addr %s296, 8
          %s298 = scalar_lea.hbm %s2, %s297
          %s300 = sshll.u32 %s285, 4
          %s301 = int_to_ptr.vmem [resolvable:$true] %s300
          %s302 = sshll.u32 %s298, 4
          %s303 = int_to_ptr.hbm [resolvable:$true] %s302
          %305 = dma.vmem_to_hbm [thread:$0]  %s301, 128, %s303, %s282
        $region40: #{tpu_custom_call.1} parent=27 // pred_fallthru
          _
        // Predicated region
        $region41: #{tpu_custom_call.1} parent=27 // pred_check
          %p306 = pneg %p133
        $region42: #{tpu_custom_call.1} parent=27 // pred_check_branch
          %308 = sbr.rel (%p306) target = $region44
        $region43: #{tpu_custom_call.1} parent=27 // pred_region
          _
        $region44: #{tpu_custom_call.1} parent=27 // pred_fallthru
          _
      $region28: #{tpu_custom_call.1} parent=5 // pred_fallthru
        _
      %p309 = scmp.le.s32.totalorder 2, %s16
      // Predicated region
      $region45: #{tpu_custom_call.1} parent=5 // pred_check
        %p310 = pneg %p309
      $region46: #{tpu_custom_call.1} parent=5 // pred_check_branch
        %312 = sbr.rel (%p310) target = $region48
      $region47: #{tpu_custom_call.1} parent=5 // pred_region
        %s313 = ssub.s32 %s16, 2
        // Predicated region
        $region49: #{tpu_custom_call.1} parent=47 // pred_check
          %p314 = pneg %p113
        $region50: #{tpu_custom_call.1} parent=47 // pred_check_branch
          %316 = sbr.rel (%p314) target = $region52
        $region51: #{tpu_custom_call.1} parent=47 // pred_region
          %s317 = sand.u32 %s98, 1
          %s318 = scalar_lea.sflag [#allocation4], %s317
          %s319 = sand.u32 %s98, 1
          %s320 = smul.addr %s319, 8
          %s321 = scalar_lea.vmem [#allocation5], %s320
          %323 = dma.done %s318, 128
        $region52: #{tpu_custom_call.1} parent=47 // pred_fallthru
          _
        // Predicated region
        $region53: #{tpu_custom_call.1} parent=47 // pred_check
          %p324 = pneg %p139
        $region54: #{tpu_custom_call.1} parent=47 // pred_check_branch
          %326 = sbr.rel (%p324) target = $region56
        $region55: #{tpu_custom_call.1} parent=47 // pred_region
          %p327 = scmp.lt.s32.totalorder %s27, 1
          %s328 = scalar_select %p327, %s27, 1
          %s329 = smul.addr %s328, 8
          %s330 = scalar_lea.vmem %s3, %s329
        $region56: #{tpu_custom_call.1} parent=47 // pred_fallthru
          _
      $region48: #{tpu_custom_call.1} parent=5 // pred_fallthru
        _
    $region6: #{tpu_custom_call.1} parent=1 // loop_footer
      %s20 = sadd.s32 1, %s16
    $region7: #{tpu_custom_call.1} parent=1 // loop_footer_branch
      %15 = sbr.rel target = $region3
    $region8: #{tpu_custom_call.1} parent=1 // loop_exit
      _
    %331 = vsyncpa [#allocation3], 1
    %s332 = scalar_lea.sflag [#allocation3], 1
    %333 = vsyncpa %s332, 1
    %334 = vsyncpa [#allocation4], 1
    %s335 = scalar_lea.sflag [#allocation4], 1
    %336 = vsyncpa %s335, 1

</llo_original>
